<compile_context>
chip_gen: v7x
topology: tpu7x:2x2x1
jax: 0.10.0
libtpu: 0.0.40
codegen_flags: <defaults>
</compile_context>

<pallas_src>
import functools
import math

import jax
import jax.numpy as jnp
from jax.experimental import pallas as pl
from jax.experimental.pallas import tpu as pltpu

LN_EPS = 1e-5
_NEG_INF = -1e30  # finite "minus infinity" for the key-padding mask


def _round_up(x, m):
  return (x + m - 1) // m * m


# ---------------------------------------------------------------------------
# In-kernel helpers (all f32 math)
# ---------------------------------------------------------------------------
def _layernorm(x, gamma, beta):
  """f32 LayerNorm over the last (feature) axis; eps matches torch (1e-5)."""
  mu = jnp.mean(x, axis=-1, keepdims=True)
  xc = x - mu
  var = jnp.mean(xc * xc, axis=-1, keepdims=True)
  return xc * jax.lax.rsqrt(var + LN_EPS) * gamma + beta


def _gelu_tanh(x):
  # TODO(synk): torch.nn.GELU() defaults to the erf-exact form; the tanh
  # approximation (~1e-3 deviation) is used since erf is not guaranteed to
  # lower in Mosaic.  The pure-JAX reference below uses the same form.
  c = 0.7978845608028654  # sqrt(2/pi)
  return 0.5 * x * (1.0 + jnp.tanh(c * (x + 0.044715 * x * x * x)))


# ---------------------------------------------------------------------------
# Kernels
# ---------------------------------------------------------------------------
def _embed_kernel(patches_ref, w_ref, base_ref, o_ref):
  """Patch-embedding matmul (bf16 x bf16 -> f32) fused with the additive base
  (patch-embedding bias + positional embedding + cls token + zero padding).

  Token order of the padded sequence is [patch tokens, cls, zero pad];
  attention and the final mean are permutation invariant, so the module
  output is unchanged while the dominant store stays sublane-aligned."""
  n_patches = patches_ref.shape[0]
  emb = jnp.dot(patches_ref[...].astype(jnp.bfloat16), w_ref[...],
                preferred_element_type=jnp.float32)
  o_ref[0:n_patches, :] = (emb + base_ref[0:n_patches, :]).astype(o_ref.dtype)
  # cls row (base already holds cls + pos[0]) and the zero padding rows.
  o_ref[n_patches:, :] = base_ref[n_patches:, :].astype(o_ref.dtype)


def _attention(x, ln_g, ln_b, wqkv, wo, bo, oattn_ref, heads, dim_head,
               n_tokens):
  """Pre-LN multi-head self-attention (returns the un-residualed output).

  Scores never leave VMEM; all matmuls use bf16 operands with f32
  accumulation; the 1/sqrt(dim_head) scale is pre-folded into wqkv."""
  n_pad = x.shape[0]
  inner = heads * dim_head

  xn = _layernorm(x, ln_g, ln_b).astype(jnp.bfloat16)
  # Single (N, D) x (D, 3*inner) fused QKV matmul.
  qkv = jnp.dot(xn, wqkv, preferred_element_type=jnp.float32)

  if n_tokens < n_pad:
    col = jax.lax.broadcasted_iota(jnp.int32, (1, n_pad), 1)
    key_pad = col >= n_tokens  # mask padded key columns for every query row

  for h in range(heads):
    c = h * dim_head
    q = qkv[:, c:c + dim_head].astype(jnp.bfloat16)
    k = qkv[:, inner + c:inner + c + dim_head].astype(jnp.bfloat16)
    v = qkv[:, 2 * inner + c:2 * inner + c + dim_head].astype(jnp.bfloat16)
    s = jax.lax.dot_general(q, k, (((1,), (1,)), ((), ())),
                            preferred_element_type=jnp.float32)  # (N, N) f32
    if n_tokens < n_pad:
      s = jnp.where(key_pad, _NEG_INF, s)
    m = jnp.max(s, axis=-1, keepdims=True)
    p = jnp.exp(s - m)
    l = jnp.sum(p, axis=-1, keepdims=True)
    o_h = jnp.dot(p.astype(jnp.bfloat16), v,
                  preferred_element_type=jnp.float32)
    o_h = o_h * pl.reciprocal(l, approx=True)  # EUP slot, near free on TPU
    oattn_ref[:, c:c + dim_head] = o_h.astype(jnp.bfloat16)

  # One full-width (N, inner) x (inner, D) output projection (full MXU depth)
  # instead of per-head K=dim_head matmuls + a serial add chain.
  return jnp.dot(oattn_ref[...], wo, preferred_element_type=jnp.float32) + bo


def _ffn(x, ln_g, ln_b, w1, b1, w2, b2):
  """Pre-LN MLP block (returns the un-residualed output)."""
  xn = _layernorm(x, ln_g, ln_b).astype(jnp.bfloat16)
  h = jnp.dot(xn, w1, preferred_element_type=jnp.float32) + b1
  h = _gelu_tanh(h).astype(jnp.bfloat16)
  return jnp.dot(h, w2, preferred_element_type=jnp.float32) + b2


def _layer_body(x, refs, oattn_ref, heads, dim_head, n_tokens):
  (g1, bt1, wqkv, wo, bo, g2, bt2, w1, b1, w2, b2) = refs
  x = x + _attention(x, g1[...], bt1[...], wqkv[...], wo[...], bo[...],
                     oattn_ref, heads, dim_head, n_tokens)
  x = x + _ffn(x, g2[...], bt2[...], w1[...], b1[...], w2[...], b2[...])
  return x


def _layer_kernel(x_ref, g1, bt1, wqkv, wo, bo, g2, bt2, w1, b1, w2, b2,
                  o_ref, oattn_ref, *, heads, dim_head, n_tokens):
  """One fused transformer layer (attention block + FFN block): the residual
  stream makes a single HBM round trip per layer."""
  y = _layer_body(x_ref[...].astype(jnp.float32),
                  (g1, bt1, wqkv, wo, bo, g2, bt2, w1, b1, w2, b2),
                  oattn_ref, heads, dim_head, n_tokens)
  o_ref[...] = y.astype(o_ref.dtype)


def _last_layer_kernel(x_ref, g1, bt1, wqkv, wo, bo, g2, bt2, w1, b1, w2, b2,
                       gf, bf, o_ref, oattn_ref, *, heads, dim_head, n_tokens):
  """Last layer fused with the final LayerNorm and the (masked) token mean,
  so the last (B, N, D) activation never goes back to HBM."""
  y = _layer_body(x_ref[...].astype(jnp.float32),
                  (g1, bt1, wqkv, wo, bo, g2, bt2, w1, b1, w2, b2),
                  oattn_ref, heads, dim_head, n_tokens)
  yn = _layernorm(y, gf[...], bf[...])
  n_pad = y.shape[0]
  if n_tokens < n_pad:
    row = jax.lax.broadcasted_iota(jnp.int32, (n_pad, 1), 0)
    yn = jnp.where(row < n_tokens, yn, 0.0)  # drop padded rows from the mean
  o_ref[...] = (jnp.sum(yn, axis=0, keepdims=True)
                * (1.0 / n_tokens)).astype(o_ref.dtype)


# ---------------------------------------------------------------------------
# pallas_call wrapper
# ---------------------------------------------------------------------------
def _batched_call(kernel, x, params, out_shape, *, scratch_shapes=(),
                  temp_bytes=0):
  """pallas_call with grid=(batch,): full (seq, feat) activation tiles per
  grid step, 2-D parameter blocks with constant index_maps (VMEM-resident
  across the grid, no per-step re-DMA), batch axis "parallel" (shards across
  v7x's two TensorCores when batch >= 2)."""
  batch = x.shape[0]
  in_specs = [pl.BlockSpec((None,) + tuple(x.shape[1:]), lambda b: (b, 0, 0))]
  # TODO(synk): at real ViT weight sizes use pipeline_mode=pl.Buffered(1) on
  #   these grid-invariant weight specs to halve their VMEM footprint.
  in_specs += [pl.BlockSpec(p.shape, lambda b: (0, 0)) for p in params]
  out_spec = pl.BlockSpec((None,) + tuple(out_shape[1:]), lambda b: (b, 0, 0))

  # Scoped-VMEM limit sized from the per-step footprint (double-buffered
  # activation blocks + resident weights + in-kernel temporaries), clamped to
  # [32 MiB, 64 MiB] so it is legal on v5e/v6e (128 MiB phys) and v7x (64 MiB).
  act_bytes = (math.prod(x.shape[1:]) * x.dtype.itemsize
               + math.prod(out_shape[1:]) * x.dtype.itemsize)
  w_bytes = sum(math.prod(p.shape) * p.dtype.itemsize for p in params)
  footprint = 4 * act_bytes + 2 * w_bytes + int(temp_bytes)
  vmem_limit = int(min(max(footprint, 32 * 1024 * 1024), 64 * 1024 * 1024))

  return pl.pallas_call(
      kernel,
      grid=(batch,),
      in_specs=in_specs,
      out_specs=out_spec,
      out_shape=jax.ShapeDtypeStruct(tuple(out_shape), x.dtype),
      scratch_shapes=list(scratch_shapes),
      compiler_params=pltpu.CompilerParams(
          dimension_semantics=("parallel",),
          vmem_limit_bytes=vmem_limit),
  )(x, *params)


# ---------------------------------------------------------------------------
# Parameters (canonical f32, PyTorch layout) + kernel-ready preparation
# ---------------------------------------------------------------------------
def init_vit_params(key, cfg):
  D = cfg["dim"]
  heads, dh = cfg["heads"], cfg["dim_head"]
  inner = heads * dh
  mlp = cfg["mlp_dim"]
  depth = cfg["depth"]
  ps, C = cfg["patch_size"], cfg["channels"]
  n_side = cfg["image_size"] // ps
  num_patches = n_side * n_side
  patch_dim = C * ps * ps

  keys = iter(jax.random.split(key, 3 + 4 * depth))

  def w(shape, std=0.02):
    return std * jax.random.normal(next(keys), shape, jnp.float32)

  params = {
      "w_pe": w((patch_dim, D)),
      "b_pe": jnp.zeros((1, D), jnp.float32),
      "cls": w((1, D), std=1.0),
      "pos": w((num_patches + 1, D), std=1.0),
      "lnf_g": jnp.ones((1, D), jnp.float32),
      "lnf_b": jnp.zeros((1, D), jnp.float32),
      "layers": [],
  }
  for _ in range(depth):
    params["layers"].append({
        "ln1_g": jnp.ones((1, D), jnp.float32),
        "ln1_b": jnp.zeros((1, D), jnp.float32),
        "w_qkv": w((D, 3 * inner)),          # concatenated QKV weight, no bias
        "w_out": w((inner, D)),              # project_out (heads > 1)
        "b_out": jnp.zeros((1, D), jnp.float32),
        "ln2_g": jnp.ones((1, D), jnp.float32),
        "ln2_b": jnp.zeros((1, D), jnp.float32),
        "w1": w((D, mlp)),
        "b1": jnp.zeros((1, mlp), jnp.float32),
        "w2": w((mlp, D)),
        "b2": jnp.zeros((1, D), jnp.float32),
    })
  return params


def prepare_vit_params(params, cfg):
  """One-time transform into kernel layout: bf16 matmul weights, the
  1/sqrt(dim_head) scale folded into the Q columns of w_qkv, and a
  precomputed (N_pad, D) additive base in [patches, cls, zero-pad] order."""
  D = cfg["dim"]
  heads, dh = cfg["heads"], cfg["dim_head"]
  inner = heads * dh
  scale = float(dh) ** -0.5
  n_side = cfg["image_size"] // cfg["patch_size"]
  num_patches = n_side * n_side
  n_tokens = num_patches + 1
  n_pad = _round_up(n_tokens, 8)

  base = jnp.concatenate([
      params["b_pe"] + params["pos"][1:],                    # patch rows
      params["cls"] + params["pos"][:1],                     # cls row
      jnp.zeros((n_pad - n_tokens, D), jnp.float32),         # padding rows
  ], axis=0)

  bf16 = lambda a: a.astype(jnp.bfloat16)
  prepared = {
      "w_pe": bf16(params["w_pe"]),
      "base": base,
      "lnf_g": params["lnf_g"],
      "lnf_b": params["lnf_b"],
      "layers": [],
  }
  for layer in params["layers"]:
    wqkv = layer["w_qkv"]
    wqkv = jnp.concatenate([wqkv[:, :inner] * scale, wqkv[:, inner:]], axis=1)
    prepared["layers"].append({
        "ln1_g": layer["ln1_g"], "ln1_b": layer["ln1_b"],
        "w_qkv": bf16(wqkv),
        "w_out": bf16(layer["w_out"]), "b_out": layer["b_out"],
        "ln2_g": layer["ln2_g"], "ln2_b": layer["ln2_b"],
        "w1": bf16(layer["w1"]), "b1": layer["b1"],
        "w2": bf16(layer["w2"]), "b2": layer["b2"],
    })
  return prepared


# ---------------------------------------------------------------------------
# Full ViTEncoder forward (Pallas) + pure-JAX reference
# ---------------------------------------------------------------------------
def vit_encoder_forward(prepared, img, cfg):
  B, C, H_img, W_img = img.shape
  ps = cfg["patch_size"]
  D = cfg["dim"]
  heads, dh = cfg["heads"], cfg["dim_head"]
  inner = heads * dh
  mlp = cfg["mlp_dim"]
  h_p, w_p = H_img // ps, W_img // ps
  num_patches = h_p * w_p
  n_tokens = num_patches + 1
  n_pad = _round_up(n_tokens, 8)

  # 'b c (h p1) (w p2) -> b (h w) (p1 p2 c)': pure layout plumbing (wrapper).
  patches = img.reshape(B, C, h_p, ps, w_p, ps)
  patches = patches.transpose(0, 2, 4, 3, 5, 1).reshape(
      B, num_patches, ps * ps * C)

  # Patch embedding + bias + positional embedding + cls token, one kernel;
  # the output is already the padded (B, N_pad, D) residual stream.
  x = _batched_call(
      _embed_kernel, patches, (prepared["w_pe"], prepared["base"]),
      (B, n_pad, D), temp_bytes=4 * n_pad * D)

  layer_kernel = functools.partial(
      _layer_kernel, heads=heads, dim_head=dh, n_tokens=n_tokens)
  last_kernel = functools.partial(
      _last_layer_kernel, heads=heads, dim_head=dh, n_tokens=n_tokens)
  oattn = pltpu.VMEM((n_pad, inner), jnp.bfloat16)
  # f32 in-kernel temporaries: qkv + per-head scores + FFN hidden (+ slack).
  temp_bytes = 4 * n_pad * (3 * inner + n_pad + mlp + 2 * D) + 2 * n_pad * inner

  def layer_args(layer):
    return (layer["ln1_g"], layer["ln1_b"], layer["w_qkv"], layer["w_out"],
            layer["b_out"], layer["ln2_g"], layer["ln2_b"], layer["w1"],
            layer["b1"], layer["w2"], layer["b2"])

  layers = prepared["layers"]
  assert len(layers) >= 1
  for layer in layers[:-1]:
    x = _batched_call(layer_kernel, x, layer_args(layer), (B, n_pad, D),
                      scratch_shapes=(oattn,), temp_bytes=temp_bytes)

  pooled = _batched_call(
      last_kernel, x,
      layer_args(layers[-1]) + (prepared["lnf_g"], prepared["lnf_b"]),
      (B, 1, D), scratch_shapes=(oattn,), temp_bytes=temp_bytes)
  return pooled[:, 0, :]


def vit_encoder_reference(params, img, cfg):
  """Pure-JAX f32 forward pass (mirrors the PyTorch module) for validation."""
  hi = jax.lax.Precision.HIGHEST
  B, C, H_img, W_img = img.shape
  ps = cfg["patch_size"]
  D = cfg["dim"]
  heads, dh = cfg["heads"], cfg["dim_head"]
  inner = heads * dh
  scale = float(dh) ** -0.5
  h_p, w_p = H_img // ps, W_img // ps

  patches = img.reshape(B, C, h_p, ps, w_p, ps)
  patches = patches.transpose(0, 2, 4, 3, 5, 1).reshape(
      B, h_p * w_p, ps * ps * C)

  x = jnp.matmul(patches, params["w_pe"], precision=hi) + params["b_pe"]
  cls = jnp.broadcast_to(params["cls"][None], (B, 1, D))
  x = jnp.concatenate([cls, x], axis=1) + params["pos"][None]

  def ln(t, g, b):
    mu = t.mean(-1, keepdims=True)
    tc = t - mu
    var = (tc * tc).mean(-1, keepdims=True)
    return tc * jax.lax.rsqrt(var + LN_EPS) * g + b

  for layer in params["layers"]:
    xn = ln(x, layer["ln1_g"], layer["ln1_b"])
    qkv = jnp.matmul(xn, layer["w_qkv"], precision=hi)
    q, k, v = jnp.split(qkv, 3, axis=-1)
    split = lambda t: t.reshape(B, -1, heads, dh).transpose(0, 2, 1, 3)
    q, k, v = split(q), split(k), split(v)
    dots = jnp.einsum("bhqd,bhkd->bhqk", q, k, precision=hi) * scale
    attn = jax.nn.softmax(dots, axis=-1)
    o = jnp.einsum("bhqk,bhkd->bhqd", attn, v, precision=hi)
    o = o.transpose(0, 2, 1, 3).reshape(B, -1, inner)
    x = jnp.matmul(o, layer["w_out"], precision=hi) + layer["b_out"] + x
    xn = ln(x, layer["ln2_g"], layer["ln2_b"])
    h1 = _gelu_tanh(jnp.matmul(xn, layer["w1"], precision=hi) + layer["b1"])
    x = jnp.matmul(h1, layer["w2"], precision=hi) + layer["b2"] + x

  x = ln(x, params["lnf_g"], params["lnf_b"])
  return x.mean(axis=1)


# ---------------------------------------------------------------------------
# Self-test
# ---------------------------------------------------------------------------
if __name__ == "__main__":
  # Small but lane-friendly shapes: dim, dim_head, mlp_dim multiples of 128;
  # the 17-token sequence exercises the token-padding / key-masking path.
  cfg = dict(image_size=16, patch_size=4, channels=3,
             dim=128, depth=2, heads=2, dim_head=128, mlp_dim=256)

  key = jax.random.PRNGKey(0)
  pkey, xkey = jax.random.split(key)
  params = init_vit_params(pkey, cfg)
  prepared = prepare_vit_params(params, cfg)
  img = jax.random.normal(
      xkey, (2, cfg["channels"], cfg["image_size"], cfg["image_size"]),
      jnp.float32)

  out = jax.block_until_ready(vit_encoder_forward(prepared, img, cfg))
  ref = jax.block_until_ready(vit_encoder_reference(params, img, cfg))

  assert out.shape == (img.shape[0], cfg["dim"]), out.shape
  max_err = float(jnp.max(jnp.abs(out - ref)))
  assert max_err < 5e-2, f"kernel/reference mismatch: max abs err = {max_err}"
  print("KERNEL_OK")
</pallas_src>

<mosaic_0001>
module attributes {stable_mosaic.version = 11 : i64} {
  func.func @_embed_kernel(%arg0: i32, %arg1: memref<1x16x48xf32, #tpu.memory_space<vmem>>, %arg2: memref<48x128xbf16, #tpu.memory_space<vmem>>, %arg3: memref<24x128xf32, #tpu.memory_space<vmem>>, %arg4: memref<1x24x128xf32, #tpu.memory_space<vmem>>) attributes {dimension_semantics = [#tpu.dimension_semantics<parallel>], iteration_bounds = array<i64: 2>, scalar_prefetch = 0 : i64, scratch_operands = 0 : i64, tpu.core_type = #tpu.core_type<tc>, window_params = [{transform_indices = @transform_0, window_bounds = array<i64: 1, 16, 48>}, {pipeline_mode = #tpu.pipeline_mode<synchronous>, transform_indices = @transform_1, window_bounds = array<i64: 48, 128>}, {pipeline_mode = #tpu.pipeline_mode<synchronous>, transform_indices = @transform_2, window_bounds = array<i64: 24, 128>}, {transform_indices = @transform_3, window_bounds = array<i64: 1, 24, 128>}]} {
    %c0 = arith.constant 0 : index
    %c0_0 = arith.constant 0 : index
    %c0_1 = arith.constant 0 : index
    %0 = vector.load %arg1[%c0, %c0_0, %c0_1] : memref<1x16x48xf32, #tpu.memory_space<vmem>>, vector<1x16x48xf32>
    %1 = vector.shape_cast %0 : vector<1x16x48xf32> to vector<16x48xf32>
    %2 = arith.truncf %1 : vector<16x48xf32> to vector<16x48xbf16>
    %c0_2 = arith.constant 0 : index
    %c0_3 = arith.constant 0 : index
    %3 = vector.load %arg2[%c0_2, %c0_3] : memref<48x128xbf16, #tpu.memory_space<vmem>>, vector<48x128xbf16>
    %cst = arith.constant dense<0.000000e+00> : vector<16x128xf32>
    %4 = tpu.matmul %2, %3, %cst {dimension_numbers = #tpu.dot_dimension_numbers<[1], [0], [0], [1], [0, 0, 1, 1], [], []>} : vector<16x48xbf16>, vector<48x128xbf16>, vector<16x128xf32> -> vector<16x128xf32>
    %c0_4 = arith.constant 0 : index
    %c0_5 = arith.constant 0 : index
    %5 = vector.load %arg3[%c0_4, %c0_5] : memref<24x128xf32, #tpu.memory_space<vmem>>, vector<16x128xf32>
    %6 = arith.addf %4, %5 : vector<16x128xf32>
    %c0_6 = arith.constant 0 : index
    %c0_7 = arith.constant 0 : index
    %c0_8 = arith.constant 0 : index
    %7 = vector.load %arg4[%c0_6, %c0_7, %c0_8] : memref<1x24x128xf32, #tpu.memory_space<vmem>>, vector<1x16x128xf32>
    %8 = vector.shape_cast %7 : vector<1x16x128xf32> to vector<16x128xf32>
    %9 = vector.shape_cast %6 : vector<16x128xf32> to vector<1x16x128xf32>
    tpu.vector_store %arg4[%c0_6, %c0_7, %c0_8], %9 {strides = array<i32>} : memref<1x24x128xf32, #tpu.memory_space<vmem>>, vector<1x16x128xf32>,
    %c16 = arith.constant 16 : index
    %c0_9 = arith.constant 0 : index
    %10 = vector.load %arg3[%c16, %c0_9] : memref<24x128xf32, #tpu.memory_space<vmem>>, vector<8x128xf32>
    %c0_10 = arith.constant 0 : index
    %c16_11 = arith.constant 16 : index
    %c0_12 = arith.constant 0 : index
    %11 = vector.load %arg4[%c0_10, %c16_11, %c0_12] : memref<1x24x128xf32, #tpu.memory_space<vmem>>, vector<1x8x128xf32>
    %12 = vector.shape_cast %11 : vector<1x8x128xf32> to vector<8x128xf32>
    %13 = vector.shape_cast %10 : vector<8x128xf32> to vector<1x8x128xf32>
    tpu.vector_store %arg4[%c0_10, %c16_11, %c0_12], %13 {strides = array<i32>} : memref<1x24x128xf32, #tpu.memory_space<vmem>>, vector<1x8x128xf32>,
    return
  }
  func.func @transform_0(%arg0: i32) -> (i32, i32, i32) {
    %c0_i32 = arith.constant 0 : i32
    %c0_i32_0 = arith.constant 0 : i32
    %c0_i32_1 = arith.constant 0 : i32
    return %arg0, %c0_i32, %c0_i32_0 : i32, i32, i32
  }
  func.func @transform_1(%arg0: i32) -> (i32, i32) {
    %c0_i32 = arith.constant 0 : i32
    %c0_i32_0 = arith.constant 0 : i32
    %c0_i32_1 = arith.constant 0 : i32
    return %c0_i32, %c0_i32_0 : i32, i32
  }
  func.func @transform_2(%arg0: i32) -> (i32, i32) {
    %c0_i32 = arith.constant 0 : i32
    %c0_i32_0 = arith.constant 0 : i32
    %c0_i32_1 = arith.constant 0 : i32
    return %c0_i32, %c0_i32_0 : i32, i32
  }
  func.func @transform_3(%arg0: i32) -> (i32, i32, i32) {
    %c0_i32 = arith.constant 0 : i32
    %c0_i32_0 = arith.constant 0 : i32
    %c0_i32_1 = arith.constant 0 : i32
    return %arg0, %c0_i32, %c0_i32_0 : i32, i32, i32
  }
}

</mosaic_0001>

<llo_original>
// kernel: tpu_custom_call.1
$region0: #{tpu_custom_call.1}
  #allocation0 [shape = 'u32[]', space=smem, size = 0x4, offset = 0x4, fixed_abs, tag = 'smem constant byte address 0x4 - core index']
  #allocation1 [shape = 'u32[144,128]{1,0:T(1,128)}', space=vmem, size = 0x12000, scoped, tag = 'internal scratch']
  %s0 = inlined_call_operand.hbm [shape: f32[2,16,48], index: 0, kind: input, shape index: {}]
  %s1 = inlined_call_operand.hbm [shape: bf16[48,128], index: 1, kind: input, shape index: {}]
  %s2 = inlined_call_operand.hbm [shape: f32[24,128], index: 2, kind: input, shape index: {}]
  %s3 = inlined_call_operand.hbm [shape: f32[2,24,128], index: 3, kind: output, shape index: {}]
  %s4 = sld [smem:[#allocation0]]
  $region57: #{tpu_custom_call.1} parent=0
    _
  %s6 = ssub.s32 1, %s4
  %s7 = scalar_select 0, %s6, %s4
  $region1: #{tpu_custom_call.1} parent=0
    #allocation2 [shape = 'u8[16384]{0}', space=vmem, size = 0x4000, scoped, tag = 'input window, operand 0']
    #allocation3 [shape = 's32[2]{0}', space=sflag, size = 0x8, scoped, tag = 'scoped memory for tpu_custom_call.1']
    #allocation4 [shape = 's32[2]{0}', space=sflag, size = 0x8, scoped, tag = 'scoped memory for tpu_custom_call.1']
    #allocation5 [shape = 'u8[12288]{0}', space=vmem, size = 0x3000, scoped, tag = 'input window, operand 1, single buffered']
    #allocation6 [shape = 's32[1]{0}', space=sflag, size = 0x4, scoped, tag = 'scoped memory for tpu_custom_call.1']
    #allocation7 [shape = 'u8[12288]{0}', space=vmem, size = 0x3000, scoped, tag = 'input window, operand 2, single buffered']
    #allocation8 [shape = 'u8[24576]{0}', space=vmem, size = 0x6000, scoped, tag = 'output window, operand 0']
    %8 = vsyncpa [#allocation3], 0
    %s9 = scalar_lea.sflag [#allocation3], 1
    %10 = vsyncpa %s9, 0
    %11 = vsyncpa [#allocation6], 0
    %12 = vsyncpa [#allocation4], 0
    %s13 = scalar_lea.sflag [#allocation4], 1
    %14 = vsyncpa %s13, 0
    loop: start=0, step=1, limit=4
    $region2: #{tpu_custom_call.1} parent=1 // loop_pre_header
      _
    $region3: #{tpu_custom_call.1} parent=1 // loop_header
      %s16 = sphi 0, %s20
      %p17 = scmp.ge.s32.totalorder %s16, 4
      %s26 = sphi 0, %s28
      %s29 = sphi 0, %s26
      %s30 = sphi 0, %s29
      %s46 = sphi 0, %s30
      %s50 = sphi 0, %s50
      %s52 = sphi 0, %s50
      %s53 = sphi 0, %s52
      %s67 = sphi 0, %s53
      %s71 = sphi 0, %s71
      %s73 = sphi 0, %s71
      %s74 = sphi 0, %s73
      %s88 = sphi 0, %s74
      %s94 = sphi 0, %s96
      %s97 = sphi 0, %s94
      %s98 = sphi 0, %s97
      %s114 = sphi 0, %s98
    $region4: #{tpu_custom_call.1} parent=1 // loop_header_branch
      %19 = sbr.rel (%p17) target = $region8
    $region5: #{tpu_custom_call.1} parent=1 // loop_body
      %s21 = ssub.s32 %s16, 1
      %s22 = ssub.s32 %s16, 2
      %s23 = sadd.s32 %s16, 1
      %s24 = ssub.s32 %s16, %s23
      %p25 = scmp.eq.s32.totalorder %s24, 0
      %s27 = sadd.s32 %s26, 1
      %s28 = scalar_select %p25, %s26, %s27
      %p31 = pneg %p25
      %p32 = scmp.eq.s32.totalorder %s16, 1
      %p33 = por %p31, %p32
      %p34 = scmp.ne.s32.totalorder %s26, %s29
      %p35 = scmp.eq.s32.totalorder %s16, 0
      %p36 = por %p34, %p35
      %p37 = scmp.ne.s32.totalorder %s26, %s29
      %p38 = scmp.eq.s32.totalorder %s21, 1
      %p39 = por %p37, %p38
      %p40 = scmp.ne.s32.totalorder %s29, %s30
      %p41 = scmp.eq.s32.totalorder %s21, 0
      %p42 = por %p40, %p41
      %p43 = scmp.ne.s32.totalorder %s29, %s30
      %p44 = scmp.eq.s32.totalorder %s22, 1
      %p45 = por %p43, %p44
      %p47 = scmp.ne.s32.totalorder %s30, %s46
      %p48 = scmp.eq.s32.totalorder %s22, 0
      %p49 = por %p47, %p48
      %s51 = sadd.s32 %s50, 1
      %p54 = scmp.eq.s32.totalorder %s16, 1
      %p55 = scmp.ne.s32.totalorder %s50, %s52
      %p56 = scmp.eq.s32.totalorder %s16, 0
      %p57 = por %p55, %p56
      %p58 = scmp.ne.s32.totalorder %s50, %s52
      %p59 = scmp.eq.s32.totalorder %s21, 1
      %p60 = por %p58, %p59
      %p61 = scmp.ne.s32.totalorder %s52, %s53
      %p62 = scmp.eq.s32.totalorder %s21, 0
      %p63 = por %p61, %p62
      %p64 = scmp.ne.s32.totalorder %s52, %s53
      %p65 = scmp.eq.s32.totalorder %s22, 1
      %p66 = por %p64, %p65
      %p68 = scmp.ne.s32.totalorder %s53, %s67
      %p69 = scmp.eq.s32.totalorder %s22, 0
      %p70 = por %p68, %p69
      %s72 = sadd.s32 %s71, 1
      %p75 = scmp.eq.s32.totalorder %s16, 1
      %p76 = scmp.ne.s32.totalorder %s71, %s73
      %p77 = scmp.eq.s32.totalorder %s16, 0
      %p78 = por %p76, %p77
      %p79 = scmp.ne.s32.totalorder %s71, %s73
      %p80 = scmp.eq.s32.totalorder %s21, 1
      %p81 = por %p79, %p80
      %p82 = scmp.ne.s32.totalorder %s73, %s74
      %p83 = scmp.eq.s32.totalorder %s21, 0
      %p84 = por %p82, %p83
      %p85 = scmp.ne.s32.totalorder %s73, %s74
      %p86 = scmp.eq.s32.totalorder %s22, 1
      %p87 = por %p85, %p86
      %p89 = scmp.ne.s32.totalorder %s74, %s88
      %p90 = scmp.eq.s32.totalorder %s22, 0
      %p91 = por %p89, %p90
      %s92 = ssub.s32 %s16, %s23
      %p93 = scmp.eq.s32.totalorder %s92, 0
      %s95 = sadd.s32 %s94, 1
      %s96 = scalar_select %p93, %s94, %s95
      %p99 = pneg %p93
      %p100 = scmp.eq.s32.totalorder %s16, 1
      %p101 = por %p99, %p100
      %p102 = scmp.ne.s32.totalorder %s94, %s97
      %p103 = scmp.eq.s32.totalorder %s16, 0
      %p104 = por %p102, %p103
      %p105 = scmp.ne.s32.totalorder %s94, %s97
      %p106 = scmp.eq.s32.totalorder %s21, 1
      %p107 = por %p105, %p106
      %p108 = scmp.ne.s32.totalorder %s97, %s98
      %p109 = scmp.eq.s32.totalorder %s21, 0
      %p110 = por %p108, %p109
      %p111 = scmp.ne.s32.totalorder %s97, %s98
      %p112 = scmp.eq.s32.totalorder %s22, 1
      %p113 = por %p111, %p112
      %p115 = scmp.ne.s32.totalorder %s98, %s114
      %p116 = scmp.eq.s32.totalorder %s22, 0
      %p117 = por %p115, %p116
      %p118 = scmp.le.s32.totalorder 1, %s16
      %p119 = scmp.lt.s32.totalorder %s16, 3
      %p120 = pnand %p118, %p119
      %p121 = pneg %p120
      // Predicated region
      $region9: #{tpu_custom_call.1} parent=5 // pred_check
        _
      $region10: #{tpu_custom_call.1} parent=5 // pred_check_branch
        %123 = sbr.rel (%p120) target = $region12
      $region11: #{tpu_custom_call.1} parent=5 // pred_region
        %s124 = ssub.s32 %s16, 1
        // Predicated region
        $region13: #{tpu_custom_call.1} parent=11 // pred_check
          %p125 = pneg %p63
        $region14: #{tpu_custom_call.1} parent=11 // pred_check_branch
          %127 = sbr.rel (%p125) target = $region16
        $region15: #{tpu_custom_call.1} parent=11 // pred_region
          %s129 = ssub.s32 384, 384
          %130 = vsyncadd [#allocation6], %s129
          %s131 = sshll.u32 [#allocation5], 4
          %s132 = int_to_ptr.vmem [resolvable:$true] %s131
          %137 = dma.hbm_to_vmem [thread:$0]  %s1, 384, %s132, [#allocation6], 64, 64, 4
        $region16: #{tpu_custom_call.1} parent=11 // pred_fallthru
          _
        // Predicated region
        $region17: #{tpu_custom_call.1} parent=11 // pred_check
          %p138 = pneg %p84
        $region18: #{tpu_custom_call.1} parent=11 // pred_check_branch
          %140 = sbr.rel (%p138) target = $region20
        $region19: #{tpu_custom_call.1} parent=11 // pred_region
          %s142 = ssub.s32 384, 384
          %143 = vsyncadd [#allocation6], %s142
          %s144 = sshll.u32 [#allocation7], 4
          %s145 = int_to_ptr.vmem [resolvable:$true] %s144
          %150 = dma.hbm_to_vmem [thread:$0]  %s2, 384, %s145, [#allocation6], 128, 128, 8
        $region20: #{tpu_custom_call.1} parent=11 // pred_fallthru
          _
      $region12: #{tpu_custom_call.1} parent=5 // pred_fallthru
        _
      %p151 = scmp.lt.s32.totalorder %s16, 2
      // Predicated region
      $region21: #{tpu_custom_call.1} parent=5 // pred_check
        %p152 = pneg %p151
      $region22: #{tpu_custom_call.1} parent=5 // pred_check_branch
        %154 = sbr.rel (%p152) target = $region24
      $region23: #{tpu_custom_call.1} parent=5 // pred_region
        // Predicated region
        $region25: #{tpu_custom_call.1} parent=23 // pred_check
          %p155 = pneg %p36
        $region26: #{tpu_custom_call.1} parent=23 // pred_check_branch
          %157 = sbr.rel (%p155) target = $region28
        $region27: #{tpu_custom_call.1} parent=23 // pred_region
          %s158 = sand.u32 %s26, 1
          %s159 = scalar_lea.sflag [#allocation3], %s158
          %s160 = sand.u32 %s26, 1
          %s161 = smul.addr %s160, 16
          %s162 = scalar_lea.vmem [#allocation2], %s161
          %s164 = ssub.s32 256, 256
          %165 = vsyncadd %s159, %s164
          %s166 = smul.addr %s16, 2
          %s167 = smul.addr %s166, 128
          %s168 = scalar_lea.hbm %s0, %s167
          %s169 = sshll.u32 %s162, 4
          %s170 = int_to_ptr.vmem [resolvable:$true] %s169
          %175 = dma.hbm_to_vmem [thread:$0]  %s168, 256, %s170, %s159, 128, 128, 8
        $region28: #{tpu_custom_call.1} parent=23 // pred_fallthru
          _
      $region24: #{tpu_custom_call.1} parent=5 // pred_fallthru
        _
      %p176 = scmp.le.s32.totalorder 1, %s16
      %p177 = scmp.lt.s32.totalorder %s16, 3
      %p178 = pnand %p176, %p177
      %p179 = pneg %p178
      // Predicated region
      $region29: #{tpu_custom_call.1} parent=5 // pred_check
        _
      $region30: #{tpu_custom_call.1} parent=5 // pred_check_branch
        %181 = sbr.rel (%p178) target = $region32
      $region31: #{tpu_custom_call.1} parent=5 // pred_region
        %s182 = ssub.s32 %s16, 1
        %s183 = sand.u32 %s29, 1
        %s184 = scalar_lea.sflag [#allocation3], %s183
        %s185 = sand.u32 %s29, 1
        %s186 = smul.addr %s185, 16
        %s187 = scalar_lea.vmem [#allocation2], %s186
        // Predicated region
        $region33: #{tpu_custom_call.1} parent=31 // pred_check
          %p188 = pneg %p42
        $region34: #{tpu_custom_call.1} parent=31 // pred_check_branch
          %190 = sbr.rel (%p188) target = $region36
        $region35: #{tpu_custom_call.1} parent=31 // pred_region
          %191 = dma.done %s184, 256
        $region36: #{tpu_custom_call.1} parent=31 // pred_fallthru
          _
        // Predicated region
        $region37: #{tpu_custom_call.1} parent=31 // pred_check
          %p192 = pneg %p63
        $region38: #{tpu_custom_call.1} parent=31 // pred_check_branch
          %194 = sbr.rel (%p192) target = $region40
        $region39: #{tpu_custom_call.1} parent=31 // pred_region
          %195 = dma.done [#allocation6], 384
        $region40: #{tpu_custom_call.1} parent=31 // pred_fallthru
          _
        // Predicated region
        $region41: #{tpu_custom_call.1} parent=31 // pred_check
          %p196 = pneg %p84
        $region42: #{tpu_custom_call.1} parent=31 // pred_check_branch
          %198 = sbr.rel (%p196) target = $region44
        $region43: #{tpu_custom_call.1} parent=31 // pred_region
          %199 = dma.done [#allocation6], 384
        $region44: #{tpu_custom_call.1} parent=31 // pred_fallthru
          _
        %s200 = sand.u32 %s29, 1
        %s201 = scalar_lea.sflag [#allocation3], %s200
        %s202 = sand.u32 %s29, 1
        %s203 = smul.addr %s202, 16
        %s204 = scalar_lea.vmem [#allocation2], %s203
        %p205 = pneg %p42
        %p206 = pneg %p39
        %p207 = pneg %p63
        %p208 = pneg %p60
        %p209 = pneg %p84
        %p210 = pneg %p81
        %p211 = pneg %p110
        %p212 = pneg %p107
        %s213 = sand.u32 %s97, 1
        %s214 = scalar_lea.sflag [#allocation4], %s213
        %s215 = sand.u32 %s97, 1
        %s216 = smul.addr %s215, 24
        %s217 = scalar_lea.vmem [#allocation8], %s216
        %v219 = vld [vmem:[%s187] sm:$0xff]
        %v220 = vld [vmem:[%s187 + $0x8] sm:$0xff]
        %v221 = vpack.c.bf16 %v220, %v219
        %v222 = vld [vmem:[#allocation5] sm:$0xf]
        %v223 = vld [vmem:[#allocation5 + $0x4] sm:$0xf]
        %v224 = vld [vmem:[#allocation5 + $0x8] sm:$0xf]
        %v225 = vld [vmem:[#allocation5 + $0xc] sm:$0xf]
        %v226 = vld [vmem:[#allocation5 + $0x10] sm:$0xf]
        %v227 = vld [vmem:[#allocation5 + $0x14] sm:$0xf]
        %v228 = vld [vmem:[#allocation7] sm:$0xff]
        %v229 = vld [vmem:[#allocation7 + $0x8] sm:$0xff]
        %v236 = vunpack.c.l.b16 %v222
        %v237 = vunpack.c.l.b16 %v223
        %v238 = vunpack.c.l.b16 %v224
        %v239 = vunpack.c.l.b16 %v225
        %v240 = vunpack.c.l.b16 %v226
        %v241 = vunpack.c.l.b16 %v227
        %v242 = vpack.c.b16 %v237, %v236
        %v243 = vpack.c.b16 %v239, %v238
        %v244 = vpack.c.b16 %v241, %v240
        %vm248 = vcmask 392192
        %v250 = vsel %vm248, %v221, 0
        %252 = vmatprep.subr.bf16.mxu0 0
        %253 = vmatpush1.bf16.msra.mxu0 %v242
        %254 = vmatprep.subr.bf16.mxu0 0
        %255 = vmatpush1.bf16.msra.mxu0 %v243
        %256 = vmatprep.subr.bf16.mxu0 0
        %257 = vmatpush1.bf16.msra.mxu0 %v244
        %258 = vmatprep.subr.bf16.mxu0 0
        %259 = vmatpush1.bf16.msra.mxu0 0
        %260 = vmatprep.subr.bf16.mxu0 0
        %261 = vmatpush1.bf16.msra.mxu0 0
        %262 = vmatprep.subr.bf16.mxu0 0
        %263 = vmatpush1.bf16.msra.mxu0 0
        %264 = vmatprep.subr.bf16.mxu0 0
        %265 = vmatpush1.bf16.msra.mxu0 0
        %266 = vmatprep.subr.bf16.mxu0 0
        %267 = vmatpush1.bf16.msra.mxu0 0
        %268 = vmatprep.subr.bf16.mxu0 0
        %269 = vmatpush1.bf16.msra.mxu0 0
        %270 = vmatprep.subr.bf16.mxu0 0
        %271 = vmatpush1.bf16.msra.mxu0 0
        %272 = vmatprep.subr.bf16.mxu0 0
        %273 = vmatpush1.bf16.msra.mxu0 0
        %274 = vmatprep.subr.bf16.mxu0 0
        %275 = vmatpush1.bf16.msra.mxu0 0
        %276 = vmatprep.subr.bf16.mxu0 0
        %277 = vmatpush1.bf16.msra.mxu0 0
        %278 = vmatprep.subr.bf16.mxu0 0
        %279 = vmatpush1.bf16.msra.mxu0 0
        %280 = vmatprep.subr.bf16.mxu0 0
        %281 = vmatpush1.bf16.msra.mxu0 0
        %282 = vmatprep.subr.bf16.mxu0 0
        %283 = vmatpush1.bf16.msra.mxu0 0
        %284 = vmatprep.mubr.bf16.mxu0 0
        %285 = vmatmul.mubr.bf16.gmra.mrb[0].mxu0 %v250
        %v286 = vpop.f32.mrb[0].mxu0
        %v287 = vadd.f32 %v228, %v286
        %v288 = vpop.f32.mrb[0].mxu0
        %v289 = vpop.f32.mrb[0].mxu0
        %v290 = vadd.f32 %v229, %v289
        %v291 = vpop.f32.mrb[0].mxu0
        %292 = vdwg.mxu0
        %293 = vst [vmem:[%s217] sm:$0xff] %v287
        %294 = vst [vmem:[%s217 + $0x8] sm:$0xff] %v290
        %v295 = vld [vmem:[#allocation7 + $0x10] sm:$0xff]
        %296 = vst [vmem:[%s217 + $0x10] sm:$0xff] %v295
        %s297 = sand.u32 %s97, 1
        %s298 = scalar_lea.sflag [#allocation4], %s297
        %s299 = sand.u32 %s97, 1
        %s300 = smul.addr %s299, 24
        %s301 = scalar_lea.vmem [#allocation8], %s300
        // Predicated region
        $region45: #{tpu_custom_call.1} parent=31 // pred_check
          %p302 = pneg %p107
        $region46: #{tpu_custom_call.1} parent=31 // pred_check_branch
          %304 = sbr.rel (%p302) target = $region48
        $region47: #{tpu_custom_call.1} parent=31 // pred_region
          %s306 = ssub.s32 384, 384
          %307 = vsyncadd %s298, %s306
          %s308 = smul.addr %s21, 3
          %s309 = smul.addr %s308, 128
          %s310 = scalar_lea.hbm %s3, %s309
          %s311 = sshll.u32 %s301, 4
          %s312 = int_to_ptr.vmem [resolvable:$true] %s311
          %317 = dma.vmem_to_hbm [thread:$0]  %s312, 384, %s310, %s298, 128, 128, 8
        $region48: #{tpu_custom_call.1} parent=31 // pred_fallthru
          _
      $region32: #{tpu_custom_call.1} parent=5 // pred_fallthru
        _
      %p318 = scmp.le.s32.totalorder 2, %s16
      // Predicated region
      $region49: #{tpu_custom_call.1} parent=5 // pred_check
        %p319 = pneg %p318
      $region50: #{tpu_custom_call.1} parent=5 // pred_check_branch
        %321 = sbr.rel (%p319) target = $region52
      $region51: #{tpu_custom_call.1} parent=5 // pred_region
        %s322 = ssub.s32 %s16, 2
        // Predicated region
        $region53: #{tpu_custom_call.1} parent=51 // pred_check
          %p323 = pneg %p113
        $region54: #{tpu_custom_call.1} parent=51 // pred_check_branch
          %325 = sbr.rel (%p323) target = $region56
        $region55: #{tpu_custom_call.1} parent=51 // pred_region
          %s326 = sand.u32 %s98, 1
          %s327 = scalar_lea.sflag [#allocation4], %s326
          %s328 = sand.u32 %s98, 1
          %s329 = smul.addr %s328, 24
          %s330 = scalar_lea.vmem [#allocation8], %s329
          %331 = dma.done %s327, 384
        $region56: #{tpu_custom_call.1} parent=51 // pred_fallthru
          _
      $region52: #{tpu_custom_call.1} parent=5 // pred_fallthru
        _
    $region6: #{tpu_custom_call.1} parent=1 // loop_footer
      %s20 = sadd.s32 1, %s16
    $region7: #{tpu_custom_call.1} parent=1 // loop_footer_branch
      %15 = sbr.rel target = $region3
    $region8: #{tpu_custom_call.1} parent=1 // loop_exit
      _
    %332 = vsyncpa [#allocation3], 1
    %s333 = scalar_lea.sflag [#allocation3], 1
    %334 = vsyncpa %s333, 1
    %335 = vsyncpa [#allocation6], 1
    %336 = vsyncpa [#allocation4], 1
    %s337 = scalar_lea.sflag [#allocation4], 1
    %338 = vsyncpa %s337, 1

</llo_original>
